<compile_context>
chip_gen: v5e
topology: v5e:2x2
jax: 0.10.0
libtpu: 0.0.40
codegen_flags: <defaults>
</compile_context>

<pallas_src>
import functools
import numpy as np
import jax
import jax.numpy as jnp
from jax.experimental import pallas as pl
from jax.experimental.pallas import tpu as pltpu

REPEAT = 10
TM = 512              # row tile for the matmul kernels (raised from 256)
MIN_PALLAS_M = 128    # below this, plain XLA beats a kernel launch


def _pick_tiles(M, tile=TM):
    """Return (padded_M, row_tile).  Keep >=2 grid steps when affordable."""
    if M > tile:
        Mp = -(-M // tile) * tile
        return Mp, tile
    if M >= 512 and M % 256 == 0:
        return M, M // 2          # 2+ steps: DMA/compute overlap + megacore
    return M, M


# ----------------------------------------------------------------------------
# Pallas kernels
# ----------------------------------------------------------------------------
def _matmul_bias_act_kernel(p_ref, w_ref, b_ref, o_ref, *, act, alpha):
    # bf16 x bf16 -> f32 accumulate on the MXU, fused bias + activation.
    acc = jnp.dot(p_ref[...], w_ref[...], preferred_element_type=jnp.float32)
    acc = acc + b_ref[...]
    if act == "relu":
        acc = jnp.maximum(acc, 0.0)
    elif act == "prelu":
        acc = jnp.where(acc >= 0.0, acc, alpha * acc)
    o_ref[...] = acc.astype(o_ref.dtype)


def _matmul_bias_act_add_kernel(p_ref, w_ref, b_ref, a_ref, o_ref, *, act, alpha):
    # Same as above plus a precomputed additive map (the hoisted constant-channel
    # contribution of the first reconstructor conv), added before the activation.
    acc = jnp.dot(p_ref[...], w_ref[...], preferred_element_type=jnp.float32)
    acc = acc + b_ref[...] + a_ref[...].astype(jnp.float32)
    if act == "relu":
        acc = jnp.maximum(acc, 0.0)
    elif act == "prelu":
        acc = jnp.where(acc >= 0.0, acc, alpha * acc)
    o_ref[...] = acc.astype(o_ref.dtype)


def _final_conv_res_kernel(p_ref, w_ref, r_ref, b_ref, o_ref):
    # Cout == 1 conv (no activation) with the residual add (output + lr) fused
    # into the epilogue.  MXU dot avoids the large f32 VPU product (vreg spills).
    acc = jnp.dot(p_ref[...], w_ref[...], preferred_element_type=jnp.float32)
    o_ref[...] = acc + b_ref[0] + r_ref[...]


# ----------------------------------------------------------------------------
# Matmul wrapper
# ----------------------------------------------------------------------------
def _act_host(acc, act, alpha):
    if act == "relu":
        return jnp.maximum(acc, 0.0)
    if act == "prelu":
        return jnp.where(acc >= 0.0, acc, alpha * acc)
    return acc


def matmul_bias_act(patches, w_mat, bias, act=None, alpha=0.25,
                    add=None, out_dtype=jnp.bfloat16):
    """(M,K) @ (K,Cout) + bias [+ add], fused activation, cdiv-tiled over M."""
    M, K = patches.shape
    K2, Cout = w_mat.shape
    assert K == K2
    if M < MIN_PALLAS_M or M % 8 != 0:
        # Tiny matmuls (regressor tail): launch overhead dominates -> plain XLA.
        acc = jnp.dot(patches.astype(jnp.bfloat16), w_mat.astype(jnp.bfloat16),
                      preferred_element_type=jnp.float32) + bias.astype(jnp.float32)
        if add is not None:
            acc = acc + add.astype(jnp.float32)
        return _act_host(acc, act, alpha).astype(out_dtype)

    Mp, tm = _pick_tiles(M)
    p_bf = patches.astype(jnp.bfloat16)
    if Mp != M:
        p_bf = jnp.pad(p_bf, ((0, Mp - M), (0, 0)))
    w_bf = w_mat.astype(jnp.bfloat16)
    b2 = bias.reshape(1, Cout).astype(jnp.float32)

    in_specs = [
        pl.BlockSpec((tm, K), lambda i: (i, 0)),
        pl.BlockSpec((K, Cout), lambda i: (0, 0)),
        pl.BlockSpec((1, Cout), lambda i: (0, 0)),
    ]
    args = [p_bf, w_bf, b2]
    if add is not None:
        a = add
        if Mp != M:
            a = jnp.pad(a, ((0, Mp - M), (0, 0)))
        in_specs.append(pl.BlockSpec((tm, Cout), lambda i: (i, 0)))
        args.append(a)
        kern = functools.partial(_matmul_bias_act_add_kernel, act=act, alpha=alpha)
    else:
        kern = functools.partial(_matmul_bias_act_kernel, act=act, alpha=alpha)

    out_itemsize = int(np.dtype(out_dtype).itemsize)
    cost = pl.CostEstimate(
        flops=2 * Mp * K * Cout, transcendentals=0,
        bytes_accessed=(Mp * K * 2 + K * Cout * 2 + Cout * 4
                        + (Mp * Cout * 2 if add is not None else 0)
                        + Mp * Cout * out_itemsize))
    # TODO(synk): lane-dense output repack (e.g. (tm,32)->(tm/4,128)) skipped:
    # at these shapes output bytes are << patch bytes, and the in-kernel
    # relayout adds lowering risk for marginal gain.
    out = pl.pallas_call(
        kern,
        out_shape=jax.ShapeDtypeStruct((Mp, Cout), out_dtype),
        grid_spec=pltpu.PrefetchScalarGridSpec(
            num_scalar_prefetch=0,
            grid=(Mp // tm,),
            in_specs=in_specs,
            out_specs=pl.BlockSpec((tm, Cout), lambda i: (i, 0)),
        ),
        compiler_params=pltpu.CompilerParams(
            dimension_semantics=("parallel",)),
        cost_estimate=cost,
    )(*args)
    return out[:M] if Mp != M else out


# ----------------------------------------------------------------------------
# Conv / Deconv wrappers (im2col glue + Pallas matmul)
# ----------------------------------------------------------------------------
def im2col(x, k, stride, pad):
    N, H, W, Cin = x.shape
    Ho = (H + 2 * pad - k) // stride + 1
    Wo = (W + 2 * pad - k) // stride + 1
    xb = x.astype(jnp.bfloat16)                       # patches built in bf16
    if pad:
        xb = jnp.pad(xb, ((0, 0), (pad, pad), (pad, pad), (0, 0)))
    cols = []
    for i in range(k):
        for j in range(k):
            cols.append(xb[:, i:i + Ho * stride:stride,
                           j:j + Wo * stride:stride, :])
    pat = jnp.stack(cols, axis=3).reshape(N * Ho * Wo, k * k * Cin)
    return pat, Ho, Wo


def conv2d(x, w_mat, bias, k, stride, pad, act=None, alpha=0.25,
           add=None, out_dtype=jnp.bfloat16):
    N = x.shape[0]
    pat, Ho, Wo = im2col(x, k, stride, pad)
    out = matmul_bias_act(pat, w_mat, bias, act=act, alpha=alpha,
                          add=add, out_dtype=out_dtype)
    return out.reshape(N, Ho, Wo, -1)


def deconv2d_subpixel(x, w_mat, bias4, act=None, alpha=0.25):
    """ConvTranspose2d(k=6, s=2, p=2) via sub-pixel decomposition.

    The four output phases come from ONE stride-1 3x3 conv with 4*Cout=128
    output channels (MXU-filling, lane-dense), pixel-shuffled (bf16) onto the
    2x grid.  Mathematically identical to the zero-insertion transposed conv.
    """
    N, H, W, _ = x.shape
    C = w_mat.shape[1] // 4
    y = conv2d(x, w_mat, bias4, 3, 1, 1, act=act, alpha=alpha)   # (N,H,W,4C) bf16
    y = y.reshape(N, H, W, 2, 2, C)
    y = y.transpose(0, 1, 3, 2, 4, 5).reshape(N, 2 * H, 2 * W, C)
    return y


def final_conv_residual(x, w_mat, bias, lr):
    """Last reconstructor conv (32->1, 3x3, no act) with `+ lr` fused in (f32)."""
    N, H, W, _ = x.shape
    pat, Ho, Wo = im2col(x, 3, 1, 1)
    M, K = pat.shape
    Mp, tm = _pick_tiles(M)
    if Mp != M:
        pat = jnp.pad(pat, ((0, Mp - M), (0, 0)))
    lr_flat = lr.reshape(M, 1).astype(jnp.float32)
    if Mp != M:
        lr_flat = jnp.pad(lr_flat, ((0, Mp - M), (0, 0)))
    w_bf = w_mat.astype(jnp.bfloat16).reshape(K, 1)
    b1 = bias.reshape(1).astype(jnp.float32)
    out = pl.pallas_call(
        _final_conv_res_kernel,
        out_shape=jax.ShapeDtypeStruct((Mp, 1), jnp.float32),
        grid_spec=pltpu.PrefetchScalarGridSpec(
            num_scalar_prefetch=0,
            grid=(Mp // tm,),
            in_specs=[
                pl.BlockSpec((tm, K), lambda i: (i, 0)),
                pl.BlockSpec((K, 1), lambda i: (0, 0)),
                pl.BlockSpec((tm, 1), lambda i: (i, 0)),
                pl.BlockSpec(memory_space=pltpu.MemorySpace.SMEM),
            ],
            out_specs=pl.BlockSpec((tm, 1), lambda i: (i, 0)),
        ),
        compiler_params=pltpu.CompilerParams(
            dimension_semantics=("parallel",)),
    )(pat, w_bf, lr_flat, b1)
    if Mp != M:
        out = out[:M]
    return out.reshape(N, Ho, Wo, 1)


# ----------------------------------------------------------------------------
# Pooling: plain XLA (standalone Pallas pool kernels were lane-sparse launch
# overhead and needed a 6-D transpose pass)
# ----------------------------------------------------------------------------
def maxpool2x2(x):
    N, H, W, C = x.shape
    Ho, Wo = H // 2, W // 2
    xr = x[:, :Ho * 2, :Wo * 2, :].reshape(N, Ho, 2, Wo, 2, C)
    return jnp.max(xr, axis=(2, 4))


# ----------------------------------------------------------------------------
# Model definition (parameters + forward)
# ----------------------------------------------------------------------------
REC_CFG = [  # (type, cin, cout, k, stride, pad, act)
    ("conv",   1 + REPEAT + 16, 128, 3, 1, 1, "prelu"),
    ("conv",   128, 32, 3, 1, 1, "prelu"),
    ("conv",   32, 32, 3, 2, 1, "prelu"),
    ("deconv", 32, 32, 6, 2, 2, "prelu"),
    ("conv",   32, 32, 3, 2, 1, "prelu"),
    ("deconv", 32, 32, 6, 2, 2, "prelu"),
    ("conv",   32, 32, 3, 2, 1, "prelu"),
    ("deconv", 32, 32, 6, 2, 2, "prelu"),
    ("conv",   32, 1, 3, 1, 1, None),
]

REG_CFG = [  # (cin, cout, k, stride, pad, act, use_bn)
    (1, 16, 3, 1, 1, "relu", True),
    (16, 32, 3, 2, 1, "relu", True),
    (32, 64, 3, 2, 1, "relu", True),
    (64, 128, 3, 2, 1, "relu", True),
    (128, 64, 1, 1, 0, "relu", False),
    (64, 16, 1, 1, 0, "relu", False),
    (16, 16, 1, 1, 0, None, False),
]


def build_params(key):
    rec = []
    for (typ, cin, cout, k, s, pad, act) in REC_CFG:
        key, sub = jax.random.split(key)
        kw_, kb_ = jax.random.split(sub)
        std = 1.0 / np.sqrt(cin * k * k)
        if typ == "conv":
            w = jax.random.normal(kw_, (cout, cin, k, k), jnp.float32) * std
            wmat = jnp.transpose(w, (2, 3, 1, 0)).reshape(k * k * cin, cout)
            bvec = jax.random.normal(kb_, (cout,), jnp.float32) * std
        else:
            # ConvTranspose2d weight (Cin, Cout, 6, 6) -> four 3x3 sub-kernels
            # (one per output phase), stacked along the output-channel axis.
            assert (k, s, pad) == (6, 2, 2)
            w = jax.random.normal(kw_, (cin, cout, k, k), jnp.float32) * std
            phase_mats = []
            for pa in range(2):
                for pb in range(2):
                    ky = np.array([4 + pa, 2 + pa, pa])      # t = 0,1,2
                    kx = np.array([4 + pb, 2 + pb, pb])
                    ws = w[:, :, ky, :][:, :, :, kx]          # (cin,cout,3,3)
                    phase_mats.append(
                        jnp.transpose(ws, (2, 3, 0, 1)).reshape(9 * cin, cout))
            wmat = jnp.concatenate(phase_mats, axis=1)        # (9*cin, 4*cout)
            b0 = jax.random.normal(kb_, (cout,), jnp.float32) * std
            bvec = jnp.tile(b0, 4)
        rec.append((wmat.astype(jnp.bfloat16), bvec.astype(jnp.float32)))

    reg = []
    bn_scale = 1.0 / np.sqrt(1.0 + 1e-5)  # eval-mode BN folded into conv
    for (cin, cout, k, s, pad, act, use_bn) in REG_CFG:
        key, sub = jax.random.split(key)
        kw_, kb_ = jax.random.split(sub)
        std = 1.0 / np.sqrt(cin * k * k)
        w = jax.random.normal(kw_, (cout, cin, k, k), jnp.float32) * std
        b = jax.random.normal(kb_, (cout,), jnp.float32) * std
        if use_bn:
            w = w * bn_scale
            b = b * bn_scale
        wmat = jnp.transpose(w, (2, 3, 1, 0)).reshape(k * k * cin, cout)
        reg.append((wmat.astype(jnp.bfloat16), b.astype(jnp.float32)))
    return {"rec": rec, "reg": reg}


def scale_regressor(reg_params, x):
    (w0, b0), (w1, b1), (w2, b2), (w3, b3), (w4, b4), (w5, b5), (w6, b6) = reg_params
    x = conv2d(x, w0, b0, 3, 1, 1, act="relu")     # Pallas (M = B*H*W)
    x = maxpool2x2(x)                              # Dropout(0.25): identity (eval)
    x = conv2d(x, w1, b1, 3, 2, 1, act="relu")     # Pallas
    x = maxpool2x2(x)
    x = conv2d(x, w2, b2, 3, 2, 1, act="relu")     # tiny -> XLA fallback inside
    x = maxpool2x2(x)
    x = conv2d(x, w3, b3, 3, 2, 1, act="relu")     # tiny -> XLA fallback inside
    x = jnp.mean(x.astype(jnp.float32), axis=(1, 2))          # AdaptiveAvgPool2d(1)
    # 1x1 conv tail on (B, C): pure XLA -- latency-bound, <100 KB of data.
    x = jnp.maximum(jnp.dot(x.astype(jnp.bfloat16), w4,
                            preferred_element_type=jnp.float32) + b4, 0.0)
    x = jnp.maximum(jnp.dot(x.astype(jnp.bfloat16), w5,
                            preferred_element_type=jnp.float32) + b5, 0.0)
    x = jnp.dot(x.astype(jnp.bfloat16), w6,
                preferred_element_type=jnp.float32) + b6
    return x                                       # (B, 16)


_scale_regressor_jit = jax.jit(scale_regressor)


@functools.partial(jax.jit, static_argnums=(3,))
def _repeat_loop(rec_params, lr0, scale_onehot, repeat):
    """Single-dispatch repeat loop (reconstructor compiled once via scan).

    The constant channels (scale one-hot + per-iteration stage one-hot) of the
    first conv are hoisted: their exact zero-padded 3x3-conv contribution is
    precomputed once via tap partials x boundary-validity masks.
    """
    B, H, W, _ = lr0.shape
    M = B * H * W

    w0_full, b0 = rec_params[0]
    Cout0 = w0_full.shape[1]
    w0_r = w0_full.reshape(3, 3, 1 + 16 + repeat, Cout0)
    w0_lr = w0_r[:, :, 0, :].reshape(9, Cout0)                # lr-channel taps
    w0_const = w0_r[:, :, 1:, :]                              # (3,3,26,Cout0)

    stage_eye = jnp.eye(repeat, dtype=jnp.float32)
    v = jnp.concatenate(
        [jnp.broadcast_to(scale_onehot[None], (repeat, B, 16)),
         jnp.broadcast_to(stage_eye[:, None, :], (repeat, B, repeat))],
        axis=-1)                                              # (repeat,B,26)
    taps = jnp.einsum("rbc,yxco->rbyxo", v.astype(jnp.bfloat16), w0_const,
                      preferred_element_type=jnp.float32)     # (repeat,B,3,3,C0)
    yy = jnp.arange(H)[:, None] + jnp.arange(3)[None, :] - 1
    Ay = ((yy >= 0) & (yy < H)).astype(jnp.float32)           # (H,3)
    xx = jnp.arange(W)[:, None] + jnp.arange(3)[None, :] - 1
    Ax = ((xx >= 0) & (xx < W)).astype(jnp.float32)           # (W,3)
    cc = jnp.einsum("yk,xl,rbklo->rbyxo", Ay, Ax, taps)       # (repeat,B,H,W,C0)
    const_contribs = cc.reshape(repeat, M, Cout0).astype(jnp.bfloat16)

    ((w1, b1), (w2, b2), (w3, b3), (w4, b4),
     (w5, b5), (w6, b6), (w7, b7), (w8, b8)) = rec_params[1:]

    def body(lr, cc_i):
        x = conv2d(lr, w0_lr, b0, 3, 1, 1, act="prelu", add=cc_i)  # 1 -> 128 (K=9)
        x = conv2d(x, w1, b1, 3, 1, 1, act="prelu")                # 128 -> 32
        x = conv2d(x, w2, b2, 3, 2, 1, act="prelu")
        x = deconv2d_subpixel(x, w3, b3, act="prelu")
        x = conv2d(x, w4, b4, 3, 2, 1, act="prelu")
        x = deconv2d_subpixel(x, w5, b5, act="prelu")
        x = conv2d(x, w6, b6, 3, 2, 1, act="prelu")
        x = deconv2d_subpixel(x, w7, b7, act="prelu")
        lr_new = final_conv_residual(x, w8, b8, lr)                # conv + lr (f32)
        return lr_new, lr_new

    _, lrs = jax.lax.scan(body, lr0.astype(jnp.float32), const_contribs)
    return lrs                                    # (repeat, B, H, W, 1)


def down_and_up_sample(x_nhwc, inv_scales):
    # TODO(synk): MATLAB-style antialiased bicubic `imresize` has no Pallas
    # equivalent; approximated with jax.image.resize (cubic, no antialias).
    B, H, W, _ = x_nhwc.shape
    outs = []
    for idx in range(B):
        s = float(inv_scales[idx])
        if s < 0.1:
            s = 0.1
        hh, ww = max(1, int(round(H * s))), max(1, int(round(W * s)))
        img = x_nhwc[idx:idx + 1]
        small = jax.image.resize(img, (1, hh, ww, 1), method="cubic")
        back = jax.image.resize(small, (1, H, W, 1), method="cubic")
        outs.append(back)
    return jnp.concatenate(outs, axis=0)


def usrn_forward(params, input_x_nchw, target_scales, repeat=REPEAT):
    """input_x_nchw: (B,1,H,W) float32 ; target_scales: (B,) host floats."""
    B, _, H, W = input_x_nchw.shape
    target_scales = np.asarray(target_scales, dtype=np.float64)
    inv_scales = 1.0 / target_scales                     # target_scales = 1/target_scales

    x_nhwc = jnp.transpose(input_x_nchw, (0, 2, 3, 1))
    lr = down_and_up_sample(x_nhwc, inv_scales)          # (B,H,W,1)

    pred_scale_raw = _scale_regressor_jit(params["reg"], lr)   # (B,16)
    pred_scale = jax.nn.softmax(pred_scale_raw, axis=1)
    # pred_scale_t (temperature softmax) is dead work in the reference forward.

    tt = (target_scales * 5.0 - 5.0).astype(np.int32)    # 1/(1/ts)*5 - 5
    scale_onehot = jax.nn.one_hot(jnp.asarray(tt), 16, dtype=jnp.float32)  # (B,16)

    lrs = _repeat_loop(params["rec"], lr, scale_onehot, repeat)  # (repeat,B,H,W,1)
    out = [jnp.transpose(lrs[i], (0, 3, 1, 2)) for i in range(repeat)]  # NCHW
    return out, pred_scale


# ----------------------------------------------------------------------------
if __name__ == "__main__":
    key = jax.random.PRNGKey(0)
    pkey, xkey = jax.random.split(key)
    params = build_params(pkey)

    B, H, W = 2, 32, 32      # smallest spatial size compatible with the regressor
    input_x = jax.random.normal(xkey, (B, 1, H, W), jnp.float32)
    target_scales = np.array([2.0, 3.0], dtype=np.float32)

    out, pred_scale = usrn_forward(params, input_x, target_scales)
    out = [jax.block_until_ready(o) for o in out]
    pred_scale = jax.block_until_ready(pred_scale)

    assert len(out) == REPEAT
    assert out[0].shape == (B, 1, H, W)
    assert pred_scale.shape == (B, 16)
    assert all(bool(jnp.all(jnp.isfinite(o))) for o in out)
    assert bool(jnp.all(jnp.isfinite(pred_scale)))
    print("KERNEL_OK")
</pallas_src>

<mosaic_0001>
module attributes {stable_mosaic.version = 11 : i64} {
  func.func @_matmul_bias_act_kernel(%arg0: i32, %arg1: memref<512x9xbf16, #tpu.memory_space<vmem>>, %arg2: memref<9x16xbf16, #tpu.memory_space<vmem>>, %arg3: memref<1x16xf32, #tpu.memory_space<vmem>>, %arg4: memref<512x16xbf16, #tpu.memory_space<vmem>>) attributes {dimension_semantics = [#tpu.dimension_semantics<parallel>], iteration_bounds = array<i64: 4>, scalar_prefetch = 0 : i64, scratch_operands = 0 : i64, tpu.core_type = #tpu.core_type<tc>, window_params = [{transform_indices = @transform_0, window_bounds = array<i64: 512, 9>}, {pipeline_mode = #tpu.pipeline_mode<synchronous>, transform_indices = @transform_1, window_bounds = array<i64: 9, 16>}, {pipeline_mode = #tpu.pipeline_mode<synchronous>, transform_indices = @transform_2, window_bounds = array<i64: 1, 16>}, {transform_indices = @transform_3, window_bounds = array<i64: 512, 16>}]} {
    %c0 = arith.constant 0 : index
    %c0_0 = arith.constant 0 : index
    %0 = vector.load %arg1[%c0, %c0_0] : memref<512x9xbf16, #tpu.memory_space<vmem>>, vector<512x9xbf16>
    %c0_1 = arith.constant 0 : index
    %c0_2 = arith.constant 0 : index
    %1 = vector.load %arg2[%c0_1, %c0_2] : memref<9x16xbf16, #tpu.memory_space<vmem>>, vector<9x16xbf16>
    %cst = arith.constant dense<0.000000e+00> : vector<512x16xf32>
    %2 = tpu.matmul %0, %1, %cst {dimension_numbers = #tpu.dot_dimension_numbers<[1], [0], [0], [1], [0, 0, 1, 1], [], []>} : vector<512x9xbf16>, vector<9x16xbf16>, vector<512x16xf32> -> vector<512x16xf32>
    %c0_3 = arith.constant 0 : index
    %c0_4 = arith.constant 0 : index
    %3 = vector.load %arg3[%c0_3, %c0_4] : memref<1x16xf32, #tpu.memory_space<vmem>>, vector<1x16xf32>
    %4 = vector.broadcast %3 : vector<1x16xf32> to vector<512x16xf32>
    %5 = arith.addf %2, %4 : vector<512x16xf32>
    %cst_5 = arith.constant 0.000000e+00 : f32
    %6 = vector.broadcast %cst_5 : f32 to vector<512x16xf32>
    %7 = arith.maximumf %5, %6 : vector<512x16xf32>
    %8 = arith.truncf %7 : vector<512x16xf32> to vector<512x16xbf16>
    %c0_6 = arith.constant 0 : index
    %c0_7 = arith.constant 0 : index
    %9 = vector.load %arg4[%c0_6, %c0_7] : memref<512x16xbf16, #tpu.memory_space<vmem>>, vector<512x16xbf16>
    tpu.vector_store %arg4[%c0_6, %c0_7], %8 {strides = array<i32>} : memref<512x16xbf16, #tpu.memory_space<vmem>>, vector<512x16xbf16>,
    return
  }
  func.func @transform_0(%arg0: i32) -> (i32, i32) {
    %c0_i32 = arith.constant 0 : i32
    %c0_i32_0 = arith.constant 0 : i32
    return %arg0, %c0_i32 : i32, i32
  }
  func.func @transform_1(%arg0: i32) -> (i32, i32) {
    %c0_i32 = arith.constant 0 : i32
    %c0_i32_0 = arith.constant 0 : i32
    %c0_i32_1 = arith.constant 0 : i32
    return %c0_i32, %c0_i32_0 : i32, i32
  }
  func.func @transform_2(%arg0: i32) -> (i32, i32) {
    %c0_i32 = arith.constant 0 : i32
    %c0_i32_0 = arith.constant 0 : i32
    %c0_i32_1 = arith.constant 0 : i32
    return %c0_i32, %c0_i32_0 : i32, i32
  }
  func.func @transform_3(%arg0: i32) -> (i32, i32) {
    %c0_i32 = arith.constant 0 : i32
    %c0_i32_0 = arith.constant 0 : i32
    return %arg0, %c0_i32 : i32, i32
  }
}

module attributes {stable_mosaic.version = 11 : i64} {
  func.func @_matmul_bias_act_kernel(%arg0: i32, %arg1: memref<128x144xbf16, #tpu.memory_space<vmem>>, %arg2: memref<144x32xbf16, #tpu.memory_space<vmem>>, %arg3: memref<1x32xf32, #tpu.memory_space<vmem>>, %arg4: memref<128x32xbf16, #tpu.memory_space<vmem>>) attributes {dimension_semantics = [#tpu.dimension_semantics<parallel>], iteration_bounds = array<i64: 1>, scalar_prefetch = 0 : i64, scratch_operands = 0 : i64, tpu.core_type = #tpu.core_type<tc>, window_params = [{transform_indices = @transform_0, window_bounds = array<i64: 128, 144>}, {pipeline_mode = #tpu.pipeline_mode<synchronous>, transform_indices = @transform_1, window_bounds = array<i64: 144, 32>}, {pipeline_mode = #tpu.pipeline_mode<synchronous>, transform_indices = @transform_2, window_bounds = array<i64: 1, 32>}, {transform_indices = @transform_3, window_bounds = array<i64: 128, 32>}]} {
    %c0 = arith.constant 0 : index
    %c0_0 = arith.constant 0 : index
    %0 = vector.load %arg1[%c0, %c0_0] : memref<128x144xbf16, #tpu.memory_space<vmem>>, vector<128x144xbf16>
    %c0_1 = arith.constant 0 : index
    %c0_2 = arith.constant 0 : index
    %1 = vector.load %arg2[%c0_1, %c0_2] : memref<144x32xbf16, #tpu.memory_space<vmem>>, vector<144x32xbf16>
    %cst = arith.constant dense<0.000000e+00> : vector<128x32xf32>
    %2 = tpu.matmul %0, %1, %cst {dimension_numbers = #tpu.dot_dimension_numbers<[1], [0], [0], [1], [0, 0, 1, 1], [], []>} : vector<128x144xbf16>, vector<144x32xbf16>, vector<128x32xf32> -> vector<128x32xf32>
    %c0_3 = arith.constant 0 : index
    %c0_4 = arith.constant 0 : index
    %3 = vector.load %arg3[%c0_3, %c0_4] : memref<1x32xf32, #tpu.memory_space<vmem>>, vector<1x32xf32>
    %4 = vector.broadcast %3 : vector<1x32xf32> to vector<128x32xf32>
    %5 = arith.addf %2, %4 : vector<128x32xf32>
    %cst_5 = arith.constant 0.000000e+00 : f32
    %6 = vector.broadcast %cst_5 : f32 to vector<128x32xf32>
    %7 = arith.maximumf %5, %6 : vector<128x32xf32>
    %8 = arith.truncf %7 : vector<128x32xf32> to vector<128x32xbf16>
    %c0_6 = arith.constant 0 : index
    %c0_7 = arith.constant 0 : index
    %9 = vector.load %arg4[%c0_6, %c0_7] : memref<128x32xbf16, #tpu.memory_space<vmem>>, vector<128x32xbf16>
    tpu.vector_store %arg4[%c0_6, %c0_7], %8 {strides = array<i32>} : memref<128x32xbf16, #tpu.memory_space<vmem>>, vector<128x32xbf16>,
    return
  }
  func.func @transform_0(%arg0: i32) -> (i32, i32) {
    %c0_i32 = arith.constant 0 : i32
    %c0_i32_0 = arith.constant 0 : i32
    return %arg0, %c0_i32 : i32, i32
  }
  func.func @transform_1(%arg0: i32) -> (i32, i32) {
    %c0_i32 = arith.constant 0 : i32
    %c0_i32_0 = arith.constant 0 : i32
    %c0_i32_1 = arith.constant 0 : i32
    return %c0_i32, %c0_i32_0 : i32, i32
  }
  func.func @transform_2(%arg0: i32) -> (i32, i32) {
    %c0_i32 = arith.constant 0 : i32
    %c0_i32_0 = arith.constant 0 : i32
    %c0_i32_1 = arith.constant 0 : i32
    return %c0_i32, %c0_i32_0 : i32, i32
  }
  func.func @transform_3(%arg0: i32) -> (i32, i32) {
    %c0_i32 = arith.constant 0 : i32
    %c0_i32_0 = arith.constant 0 : i32
    return %arg0, %c0_i32 : i32, i32
  }
}

</mosaic_0001>

<llo_original>
// kernel: scale_regressor.2
$region0: #{scale_regressor.2}
  #allocation0 [shape = 'u32[]', space=smem, size = 0x4, offset = 0x4, fixed_abs, tag = 'smem constant byte address 0x4 - core index']
  #allocation1 [shape = 'u32[72,128]{1,0:T(1,128)}', space=vmem, size = 0x9000, scoped, tag = 'internal scratch']
  %s0 = inlined_call_operand.vmem [shape: bf16[2048,9], index: 0, kind: input, shape index: {}]
  %s1 = inlined_call_operand.vmem [shape: bf16[9,16], index: 1, kind: input, shape index: {}]
  %s2 = inlined_call_operand.vmem [shape: f32[1,16], index: 2, kind: input, shape index: {}]
  %s3 = inlined_call_operand.vmem [shape: bf16[2048,16], index: 3, kind: output, shape index: {}]
  %s4 = sld [smem:[#allocation0]]
  $region45: #{scale_regressor.2} parent=0
    _
  %s6 = ssub.s32 1, %s4
  %s7 = scalar_select 0, %s6, %s4
  loop: start=0, step=1, limit=6
  $region2: #{scale_regressor.2} parent=0 // loop_pre_header
    _
  $region3: #{scale_regressor.2} parent=0 // loop_header
    %s9 = sphi 0, %s13
    %p10 = scmp.ge.s32.totalorder %s9, 6
    %s19 = sphi 0, %s21
    %s22 = sphi 0, %s19
    %s23 = sphi 0, %s22
    %s39 = sphi 0, %s23
    %s43 = sphi 0, %s43
    %s45 = sphi 0, %s43
    %s46 = sphi 0, %s45
    %s60 = sphi 0, %s46
    %s64 = sphi 0, %s64
    %s66 = sphi 0, %s64
    %s67 = sphi 0, %s66
    %s81 = sphi 0, %s67
    %s87 = sphi 0, %s89
    %s90 = sphi 0, %s87
    %s91 = sphi 0, %s90
    %s107 = sphi 0, %s91
  $region4: #{scale_regressor.2} parent=0 // loop_header_branch
    %12 = sbr.rel (%p10) target = $region8
  $region5: #{scale_regressor.2} parent=0 // loop_body
    %s14 = ssub.s32 %s9, 1
    %s15 = ssub.s32 %s9, 2
    %s16 = sadd.s32 %s9, 1
    %s17 = ssub.s32 %s9, %s16
    %p18 = scmp.eq.s32.totalorder %s17, 0
    %s20 = sadd.s32 %s19, 1
    %s21 = scalar_select %p18, %s19, %s20
    %p24 = pneg %p18
    %p25 = scmp.eq.s32.totalorder %s9, 3
    %p26 = por %p24, %p25
    %p27 = scmp.ne.s32.totalorder %s19, %s22
    %p28 = scmp.eq.s32.totalorder %s9, 0
    %p29 = por %p27, %p28
    %p30 = scmp.ne.s32.totalorder %s19, %s22
    %p31 = scmp.eq.s32.totalorder %s14, 3
    %p32 = por %p30, %p31
    %p33 = scmp.ne.s32.totalorder %s22, %s23
    %p34 = scmp.eq.s32.totalorder %s14, 0
    %p35 = por %p33, %p34
    %p36 = scmp.ne.s32.totalorder %s22, %s23
    %p37 = scmp.eq.s32.totalorder %s15, 3
    %p38 = por %p36, %p37
    %p40 = scmp.ne.s32.totalorder %s23, %s39
    %p41 = scmp.eq.s32.totalorder %s15, 0
    %p42 = por %p40, %p41
    %s44 = sadd.s32 %s43, 1
    %p47 = scmp.eq.s32.totalorder %s9, 3
    %p48 = scmp.ne.s32.totalorder %s43, %s45
    %p49 = scmp.eq.s32.totalorder %s9, 0
    %p50 = por %p48, %p49
    %p51 = scmp.ne.s32.totalorder %s43, %s45
    %p52 = scmp.eq.s32.totalorder %s14, 3
    %p53 = por %p51, %p52
    %p54 = scmp.ne.s32.totalorder %s45, %s46
    %p55 = scmp.eq.s32.totalorder %s14, 0
    %p56 = por %p54, %p55
    %p57 = scmp.ne.s32.totalorder %s45, %s46
    %p58 = scmp.eq.s32.totalorder %s15, 3
    %p59 = por %p57, %p58
    %p61 = scmp.ne.s32.totalorder %s46, %s60
    %p62 = scmp.eq.s32.totalorder %s15, 0
    %p63 = por %p61, %p62
    %s65 = sadd.s32 %s64, 1
    %p68 = scmp.eq.s32.totalorder %s9, 3
    %p69 = scmp.ne.s32.totalorder %s64, %s66
    %p70 = scmp.eq.s32.totalorder %s9, 0
    %p71 = por %p69, %p70
    %p72 = scmp.ne.s32.totalorder %s64, %s66
    %p73 = scmp.eq.s32.totalorder %s14, 3
    %p74 = por %p72, %p73
    %p75 = scmp.ne.s32.totalorder %s66, %s67
    %p76 = scmp.eq.s32.totalorder %s14, 0
    %p77 = por %p75, %p76
    %p78 = scmp.ne.s32.totalorder %s66, %s67
    %p79 = scmp.eq.s32.totalorder %s15, 3
    %p80 = por %p78, %p79
    %p82 = scmp.ne.s32.totalorder %s67, %s81
    %p83 = scmp.eq.s32.totalorder %s15, 0
    %p84 = por %p82, %p83
    %s85 = ssub.s32 %s9, %s16
    %p86 = scmp.eq.s32.totalorder %s85, 0
    %s88 = sadd.s32 %s87, 1
    %s89 = scalar_select %p86, %s87, %s88
    %p92 = pneg %p86
    %p93 = scmp.eq.s32.totalorder %s9, 3
    %p94 = por %p92, %p93
    %p95 = scmp.ne.s32.totalorder %s87, %s90
    %p96 = scmp.eq.s32.totalorder %s9, 0
    %p97 = por %p95, %p96
    %p98 = scmp.ne.s32.totalorder %s87, %s90
    %p99 = scmp.eq.s32.totalorder %s14, 3
    %p100 = por %p98, %p99
    %p101 = scmp.ne.s32.totalorder %s90, %s91
    %p102 = scmp.eq.s32.totalorder %s14, 0
    %p103 = por %p101, %p102
    %p104 = scmp.ne.s32.totalorder %s90, %s91
    %p105 = scmp.eq.s32.totalorder %s15, 3
    %p106 = por %p104, %p105
    %p108 = scmp.ne.s32.totalorder %s91, %s107
    %p109 = scmp.eq.s32.totalorder %s15, 0
    %p110 = por %p108, %p109
    %p111 = scmp.le.s32.totalorder 1, %s9
    %p112 = scmp.lt.s32.totalorder %s9, 5
    %p113 = pnand %p111, %p112
    %p114 = pneg %p113
    // Predicated region
    $region9: #{scale_regressor.2} parent=5 // pred_check
      _
    $region10: #{scale_regressor.2} parent=5 // pred_check_branch
      %116 = sbr.rel (%p113) target = $region12
    $region11: #{scale_regressor.2} parent=5 // pred_region
      %s117 = ssub.s32 %s9, 1
      // Predicated region
      $region13: #{scale_regressor.2} parent=11 // pred_check
        %p118 = pneg %p56
      $region14: #{scale_regressor.2} parent=11 // pred_check_branch
        %120 = sbr.rel (%p118) target = $region16
      $region15: #{scale_regressor.2} parent=11 // pred_region
        _
      $region16: #{scale_regressor.2} parent=11 // pred_fallthru
        _
      // Predicated region
      $region17: #{scale_regressor.2} parent=11 // pred_check
        %p121 = pneg %p77
      $region18: #{scale_regressor.2} parent=11 // pred_check_branch
        %123 = sbr.rel (%p121) target = $region20
      $region19: #{scale_regressor.2} parent=11 // pred_region
        _
      $region20: #{scale_regressor.2} parent=11 // pred_fallthru
        _
    $region12: #{scale_regressor.2} parent=5 // pred_fallthru
      _
    %p124 = scmp.lt.s32.totalorder %s9, 4
    // Predicated region
    $region21: #{scale_regressor.2} parent=5 // pred_check
      %p125 = pneg %p124
    $region22: #{scale_regressor.2} parent=5 // pred_check_branch
      %127 = sbr.rel (%p125) target = $region24
    $region23: #{scale_regressor.2} parent=5 // pred_region
      // Predicated region
      $region25: #{scale_regressor.2} parent=23 // pred_check
        %p128 = pneg %p29
      $region26: #{scale_regressor.2} parent=23 // pred_check_branch
        %130 = sbr.rel (%p128) target = $region28
      $region27: #{scale_regressor.2} parent=23 // pred_region
        %s131 = smul.u32 64, %s9
        %p132 = scmp.lt.s32.totalorder %s131, 255
        %s133 = scalar_select %p132, %s131, 255
        %s134 = smul.addr %s133, 4
        %s135 = scalar_lea.vmem %s0, %s134
        %s136 = smul.u32 64, %s9
      $region28: #{scale_regressor.2} parent=23 // pred_fallthru
        _
    $region24: #{scale_regressor.2} parent=5 // pred_fallthru
      _
    %p137 = scmp.le.s32.totalorder 1, %s9
    %p138 = scmp.lt.s32.totalorder %s9, 5
    %p139 = pnand %p137, %p138
    %p140 = pneg %p139
    // Predicated region
    $region29: #{scale_regressor.2} parent=5 // pred_check
      _
    $region30: #{scale_regressor.2} parent=5 // pred_check_branch
      %142 = sbr.rel (%p139) target = $region32
    $region31: #{scale_regressor.2} parent=5 // pred_region
      %s143 = ssub.s32 %s9, 1
      %s144 = smul.u32 64, %s14
      %p145 = scmp.lt.s32.totalorder %s144, 255
      %s146 = scalar_select %p145, %s144, 255
      %s147 = smul.addr %s146, 4
      %s148 = scalar_lea.vmem %s0, %s147
      %p149 = pneg %p35
      %p150 = pneg %p32
      %p151 = pneg %p56
      %p152 = pneg %p53
      %p153 = pneg %p77
      %p154 = pneg %p74
      %p155 = pneg %p103
      %p156 = pneg %p100
      %s157 = smul.u32 64, %s14
      %p158 = scmp.lt.s32.totalorder %s157, 255
      %s159 = scalar_select %p158, %s157, 255
      %s160 = smul.addr %s159, 4
      %s161 = scalar_lea.vmem %s3, %s160
      %s162 = smul.u32 64, %s14
      %p163 = scmp.lt.s32.totalorder %s162, 255
      %s164 = scalar_select %p163, %s162, 255
      %s165 = smul.addr %s164, 4
      %s166 = scalar_lea.vmem %s0, %s165
      %s167 = smul.u32 64, %s14
      %s168 = smul.u32 64, %s14
      %p169 = scmp.lt.s32.totalorder %s168, 255
      %s170 = scalar_select %p169, %s168, 255
      %s171 = smul.addr %s170, 4
      %s172 = scalar_lea.vmem %s3, %s171
      %s173 = smul.u32 64, %s14
      %v175 = vld [vmem:[%s166] sm:$0xf]
      %v176 = vld [vmem:[%s166 + $0x4] sm:$0xf]
      %v177 = vld [vmem:[%s166 + $0x8] sm:$0xf]
      %v178 = vld [vmem:[%s166 + $0xc] sm:$0xf]
      %v179 = vld [vmem:[%s166 + $0x10] sm:$0xf]
      %v180 = vld [vmem:[%s166 + $0x14] sm:$0xf]
      %v181 = vld [vmem:[%s166 + $0x18] sm:$0xf]
      %v182 = vld [vmem:[%s166 + $0x1c] sm:$0xf]
      %v183 = vld [vmem:[%s166 + $0x20] sm:$0xf]
      %v184 = vld [vmem:[%s166 + $0x24] sm:$0xf]
      %v185 = vld [vmem:[%s166 + $0x28] sm:$0xf]
      %v186 = vld [vmem:[%s166 + $0x2c] sm:$0xf]
      %v187 = vld [vmem:[%s166 + $0x30] sm:$0xf]
      %v188 = vld [vmem:[%s166 + $0x34] sm:$0xf]
      %v189 = vld [vmem:[%s166 + $0x38] sm:$0xf]
      %v190 = vld [vmem:[%s166 + $0x3c] sm:$0xf]
      %v191 = vld [vmem:[%s166 + $0x40] sm:$0xf]
      %v192 = vld [vmem:[%s166 + $0x44] sm:$0xf]
      %v193 = vld [vmem:[%s166 + $0x48] sm:$0xf]
      %v194 = vld [vmem:[%s166 + $0x4c] sm:$0xf]
      %v195 = vld [vmem:[%s166 + $0x50] sm:$0xf]
      %v196 = vld [vmem:[%s166 + $0x54] sm:$0xf]
      %v197 = vld [vmem:[%s166 + $0x58] sm:$0xf]
      %v198 = vld [vmem:[%s166 + $0x5c] sm:$0xf]
      %v199 = vld [vmem:[%s166 + $0x60] sm:$0xf]
      %v200 = vld [vmem:[%s166 + $0x64] sm:$0xf]
      %v201 = vld [vmem:[%s166 + $0x68] sm:$0xf]
      %v202 = vld [vmem:[%s166 + $0x6c] sm:$0xf]
      %v203 = vld [vmem:[%s166 + $0x70] sm:$0xf]
      %v204 = vld [vmem:[%s166 + $0x74] sm:$0xf]
      %v205 = vld [vmem:[%s166 + $0x78] sm:$0xf]
      %v206 = vld [vmem:[%s166 + $0x7c] sm:$0xf]
      %v207 = vld [vmem:[%s166 + $0x80] sm:$0xf]
      %v208 = vld [vmem:[%s166 + $0x84] sm:$0xf]
      %v209 = vld [vmem:[%s166 + $0x88] sm:$0xf]
      %v210 = vld [vmem:[%s166 + $0x8c] sm:$0xf]
      %v211 = vld [vmem:[%s166 + $0x90] sm:$0xf]
      %v212 = vld [vmem:[%s166 + $0x94] sm:$0xf]
      %v213 = vld [vmem:[%s166 + $0x98] sm:$0xf]
      %v214 = vld [vmem:[%s166 + $0x9c] sm:$0xf]
      %v215 = vld [vmem:[%s166 + $0xa0] sm:$0xf]
      %v216 = vld [vmem:[%s166 + $0xa4] sm:$0xf]
      %v217 = vld [vmem:[%s166 + $0xa8] sm:$0xf]
      %v218 = vld [vmem:[%s166 + $0xac] sm:$0xf]
      %v219 = vld [vmem:[%s166 + $0xb0] sm:$0xf]
      %v220 = vld [vmem:[%s166 + $0xb4] sm:$0xf]
      %v221 = vld [vmem:[%s166 + $0xb8] sm:$0xf]
      %v222 = vld [vmem:[%s166 + $0xbc] sm:$0xf]
      %v223 = vld [vmem:[%s166 + $0xc0] sm:$0xf]
      %v224 = vld [vmem:[%s166 + $0xc4] sm:$0xf]
      %v225 = vld [vmem:[%s166 + $0xc8] sm:$0xf]
      %v226 = vld [vmem:[%s166 + $0xcc] sm:$0xf]
      %v227 = vld [vmem:[%s166 + $0xd0] sm:$0xf]
      %v228 = vld [vmem:[%s166 + $0xd4] sm:$0xf]
      %v229 = vld [vmem:[%s166 + $0xd8] sm:$0xf]
      %v230 = vld [vmem:[%s166 + $0xdc] sm:$0xf]
      %v231 = vld [vmem:[%s166 + $0xe0] sm:$0xf]
      %v232 = vld [vmem:[%s166 + $0xe4] sm:$0xf]
      %v233 = vld [vmem:[%s166 + $0xe8] sm:$0xf]
      %v234 = vld [vmem:[%s166 + $0xec] sm:$0xf]
      %v235 = vld [vmem:[%s166 + $0xf0] sm:$0xf]
      %v236 = vld [vmem:[%s166 + $0xf4] sm:$0xf]
      %v237 = vld [vmem:[%s166 + $0xf8] sm:$0xf]
      %v238 = vld [vmem:[%s166 + $0xfc] sm:$0xf]
      %v239 = vld [vmem:[%s1] sm:$0xf]
      %v240 = vld [vmem:[%s1 + $0x4] sm:$0x1]
      %v241 = vld [vmem:[%s2] sm:$0x1]
      %v243 = vperm.slane %v241, 0
      %v309 = vunpack.c.l.b16 %v175
      %v310 = vunpack.c.l.b16 %v176
      %v311 = vunpack.c.l.b16 %v177
      %v312 = vunpack.c.l.b16 %v178
      %v313 = vunpack.c.l.b16 %v179
      %v314 = vunpack.c.l.b16 %v180
      %v315 = vunpack.c.l.b16 %v181
      %v316 = vunpack.c.l.b16 %v182
      %v317 = vunpack.c.l.b16 %v183
      %v318 = vunpack.c.l.b16 %v184
      %v319 = vunpack.c.l.b16 %v185
      %v320 = vunpack.c.l.b16 %v186
      %v321 = vunpack.c.l.b16 %v187
      %v322 = vunpack.c.l.b16 %v188
      %v323 = vunpack.c.l.b16 %v189
      %v324 = vunpack.c.l.b16 %v190
      %v325 = vunpack.c.l.b16 %v191
      %v326 = vunpack.c.l.b16 %v192
      %v327 = vunpack.c.l.b16 %v193
      %v328 = vunpack.c.l.b16 %v194
      %v329 = vunpack.c.l.b16 %v195
      %v330 = vunpack.c.l.b16 %v196
      %v331 = vunpack.c.l.b16 %v197
      %v332 = vunpack.c.l.b16 %v198
      %v333 = vunpack.c.l.b16 %v199
      %v334 = vunpack.c.l.b16 %v200
      %v335 = vunpack.c.l.b16 %v201
      %v336 = vunpack.c.l.b16 %v202
      %v337 = vunpack.c.l.b16 %v203
      %v338 = vunpack.c.l.b16 %v204
      %v339 = vunpack.c.l.b16 %v205
      %v340 = vunpack.c.l.b16 %v206
      %v341 = vunpack.c.l.b16 %v207
      %v342 = vunpack.c.l.b16 %v208
      %v343 = vunpack.c.l.b16 %v209
      %v344 = vunpack.c.l.b16 %v210
      %v345 = vunpack.c.l.b16 %v211
      %v346 = vunpack.c.l.b16 %v212
      %v347 = vunpack.c.l.b16 %v213
      %v348 = vunpack.c.l.b16 %v214
      %v349 = vunpack.c.l.b16 %v215
      %v350 = vunpack.c.l.b16 %v216
      %v351 = vunpack.c.l.b16 %v217
      %v352 = vunpack.c.l.b16 %v218
      %v353 = vunpack.c.l.b16 %v219
      %v354 = vunpack.c.l.b16 %v220
      %v355 = vunpack.c.l.b16 %v221
      %v356 = vunpack.c.l.b16 %v222
      %v357 = vunpack.c.l.b16 %v223
      %v358 = vunpack.c.l.b16 %v224
      %v359 = vunpack.c.l.b16 %v225
      %v360 = vunpack.c.l.b16 %v226
      %v361 = vunpack.c.l.b16 %v227
      %v362 = vunpack.c.l.b16 %v228
      %v363 = vunpack.c.l.b16 %v229
      %v364 = vunpack.c.l.b16 %v230
      %v365 = vunpack.c.l.b16 %v231
      %v366 = vunpack.c.l.b16 %v232
      %v367 = vunpack.c.l.b16 %v233
      %v368 = vunpack.c.l.b16 %v234
      %v369 = vunpack.c.l.b16 %v235
      %v370 = vunpack.c.l.b16 %v236
      %v371 = vunpack.c.l.b16 %v237
      %v372 = vunpack.c.l.b16 %v238
      %v373 = vpack.c.b16 %v310, %v309
      %v374 = vpack.c.b16 %v312, %v311
      %v375 = vpack.c.b16 %v314, %v313
      %v376 = vpack.c.b16 %v316, %v315
      %v377 = vpack.c.b16 %v318, %v317
      %v378 = vpack.c.b16 %v320, %v319
      %v379 = vpack.c.b16 %v322, %v321
      %v380 = vpack.c.b16 %v324, %v323
      %v381 = vpack.c.b16 %v326, %v325
      %v382 = vpack.c.b16 %v328, %v327
      %v383 = vpack.c.b16 %v330, %v329
      %v384 = vpack.c.b16 %v332, %v331
      %v385 = vpack.c.b16 %v334, %v333
      %v386 = vpack.c.b16 %v336, %v335
      %v387 = vpack.c.b16 %v338, %v337
      %v388 = vpack.c.b16 %v340, %v339
      %v389 = vpack.c.b16 %v342, %v341
      %v390 = vpack.c.b16 %v344, %v343
      %v391 = vpack.c.b16 %v346, %v345
      %v392 = vpack.c.b16 %v348, %v347
      %v393 = vpack.c.b16 %v350, %v349
      %v394 = vpack.c.b16 %v352, %v351
      %v395 = vpack.c.b16 %v354, %v353
      %v396 = vpack.c.b16 %v356, %v355
      %v397 = vpack.c.b16 %v358, %v357
      %v398 = vpack.c.b16 %v360, %v359
      %v399 = vpack.c.b16 %v362, %v361
      %v400 = vpack.c.b16 %v364, %v363
      %v401 = vpack.c.b16 %v366, %v365
      %v402 = vpack.c.b16 %v368, %v367
      %v403 = vpack.c.b16 %v370, %v369
      %v404 = vpack.c.b16 %v372, %v371
      %v407 = vunpack.c.l.b16 %v239
      %v408 = vunpack.c.l.b16 %v240
      %v409 = vpack.c.b16 %v408, %v407
      %vm410 = vcmask 72704
      %v412 = vsel %vm410, %v373, 0
      %v415 = vsel %vm410, %v374, 0
      %v418 = vsel %vm410, %v375, 0
      %v421 = vsel %vm410, %v376, 0
      %v424 = vsel %vm410, %v377, 0
      %v427 = vsel %vm410, %v378, 0
      %v430 = vsel %vm410, %v379, 0
      %v433 = vsel %vm410, %v380, 0
      %v436 = vsel %vm410, %v381, 0
      %v439 = vsel %vm410, %v382, 0
      %v442 = vsel %vm410, %v383, 0
      %v445 = vsel %vm410, %v384, 0
      %v448 = vsel %vm410, %v385, 0
      %v451 = vsel %vm410, %v386, 0
      %v454 = vsel %vm410, %v387, 0
      %v457 = vsel %vm410, %v388, 0
      %v460 = vsel %vm410, %v389, 0
      %v463 = vsel %vm410, %v390, 0
      %v466 = vsel %vm410, %v391, 0
      %v469 = vsel %vm410, %v392, 0
      %v472 = vsel %vm410, %v393, 0
      %v475 = vsel %vm410, %v394, 0
      %v478 = vsel %vm410, %v395, 0
      %v481 = vsel %vm410, %v396, 0
      %v484 = vsel %vm410, %v397, 0
      %v487 = vsel %vm410, %v398, 0
      %v490 = vsel %vm410, %v399, 0
      %v493 = vsel %vm410, %v400, 0
      %v496 = vsel %vm410, %v401, 0
      %v499 = vsel %vm410, %v402, 0
      %v502 = vsel %vm410, %v403, 0
      %v505 = vsel %vm410, %v404, 0
      %vm507 = vcmask 1043456
      %vm508 = vcmask 1044480
      %v509 = vsel %vm507, 4294967295, 65535
      %v510 = vsel %vm508, %v509, 0
      %v512 = vand.u32 %v409, %v510
      %514 = vmatpush.bf16.msra.mxu0 0
      %515 = vmatpush.bf16.msra.mxu0 0
      %516 = vmatpush.bf16.msra.mxu0 0
      %517 = vmatpush.bf16.msra.mxu0 0
      %518 = vmatpush.bf16.msra.mxu0 0
      %519 = vmatpush.bf16.msra.mxu0 0
      %520 = vmatpush.bf16.msra.mxu0 0
      %521 = vmatpush.bf16.msra.mxu0 %v512
      %522 = vmatmul.bf16.gmra.mxu0 %v412
      %v523 = vpop.f32.mrf.mxu0
      %v524 = vadd.f32 %v243, %v523
      %v525 = vpop.f32.mrf.mxu0
      %v526 = vadd.f32 %v243, %v525
      %527 = vmatmul.bf16.gmra.mxu0 %v415
      %v528 = vpop.f32.mrf.mxu0
      %v529 = vadd.f32 %v243, %v528
      %v530 = vpop.f32.mrf.mxu0
      %v531 = vadd.f32 %v243, %v530
      %532 = vmatmul.bf16.gmra.mxu0 %v418
      %v533 = vpop.f32.mrf.mxu0
      %v534 = vadd.f32 %v243, %v533
      %v535 = vpop.f32.mrf.mxu0
      %v536 = vadd.f32 %v243, %v535
      %537 = vmatmul.bf16.gmra.mxu0 %v421
      %v538 = vpop.f32.mrf.mxu0
      %v539 = vadd.f32 %v243, %v538
      %v540 = vpop.f32.mrf.mxu0
      %v541 = vadd.f32 %v243, %v540
      %542 = vmatmul.bf16.gmra.mxu0 %v424
      %v543 = vpop.f32.mrf.mxu0
      %v544 = vadd.f32 %v243, %v543
      %v545 = vpop.f32.mrf.mxu0
      %v546 = vadd.f32 %v243, %v545
      %547 = vmatmul.bf16.gmra.mxu0 %v427
      %v548 = vpop.f32.mrf.mxu0
      %v549 = vadd.f32 %v243, %v548
      %v550 = vpop.f32.mrf.mxu0
      %v551 = vadd.f32 %v243, %v550
      %552 = vmatmul.bf16.gmra.mxu0 %v430
      %v553 = vpop.f32.mrf.mxu0
      %v554 = vadd.f32 %v243, %v553
      %v555 = vpop.f32.mrf.mxu0
      %v556 = vadd.f32 %v243, %v555
      %557 = vmatmul.bf16.gmra.mxu0 %v433
      %v558 = vpop.f32.mrf.mxu0
      %v559 = vadd.f32 %v243, %v558
      %v560 = vpop.f32.mrf.mxu0
      %v561 = vadd.f32 %v243, %v560
      %562 = vmatmul.bf16.gmra.mxu0 %v436
      %v563 = vpop.f32.mrf.mxu0
      %v564 = vadd.f32 %v243, %v563
      %v565 = vpop.f32.mrf.mxu0
      %v566 = vadd.f32 %v243, %v565
      %567 = vmatmul.bf16.gmra.mxu0 %v439
      %v568 = vpop.f32.mrf.mxu0
      %v569 = vadd.f32 %v243, %v568
      %v570 = vpop.f32.mrf.mxu0
      %v571 = vadd.f32 %v243, %v570
      %572 = vmatmul.bf16.gmra.mxu0 %v442
      %v573 = vpop.f32.mrf.mxu0
      %v574 = vadd.f32 %v243, %v573
      %v575 = vpop.f32.mrf.mxu0
      %v576 = vadd.f32 %v243, %v575
      %577 = vmatmul.bf16.gmra.mxu0 %v445
      %v578 = vpop.f32.mrf.mxu0
      %v579 = vadd.f32 %v243, %v578
      %v580 = vpop.f32.mrf.mxu0
      %v581 = vadd.f32 %v243, %v580
      %582 = vmatmul.bf16.gmra.mxu0 %v448
      %v583 = vpop.f32.mrf.mxu0
      %v584 = vadd.f32 %v243, %v583
      %v585 = vpop.f32.mrf.mxu0
      %v586 = vadd.f32 %v243, %v585
      %587 = vmatmul.bf16.gmra.mxu0 %v451
      %v588 = vpop.f32.mrf.mxu0
      %v589 = vadd.f32 %v243, %v588
      %v590 = vpop.f32.mrf.mxu0
      %v591 = vadd.f32 %v243, %v590
      %592 = vmatmul.bf16.gmra.mxu0 %v454
      %v593 = vpop.f32.mrf.mxu0
      %v594 = vadd.f32 %v243, %v593
      %v595 = vpop.f32.mrf.mxu0
      %v596 = vadd.f32 %v243, %v595
      %597 = vmatmul.bf16.gmra.mxu0 %v457
      %v598 = vpop.f32.mrf.mxu0
      %v599 = vadd.f32 %v243, %v598
      %v600 = vpop.f32.mrf.mxu0
      %v601 = vadd.f32 %v243, %v600
      %602 = vmatmul.bf16.gmra.mxu0 %v460
      %v603 = vpop.f32.mrf.mxu0
      %v604 = vadd.f32 %v243, %v603
      %v605 = vpop.f32.mrf.mxu0
      %v606 = vadd.f32 %v243, %v605
      %607 = vmatmul.bf16.gmra.mxu0 %v463
      %v608 = vpop.f32.mrf.mxu0
      %v609 = vadd.f32 %v243, %v608
      %v610 = vpop.f32.mrf.mxu0
      %v611 = vadd.f32 %v243, %v610
      %612 = vmatmul.bf16.gmra.mxu0 %v466
      %v613 = vpop.f32.mrf.mxu0
      %v614 = vadd.f32 %v243, %v613
      %v615 = vpop.f32.mrf.mxu0
      %v616 = vadd.f32 %v243, %v615
      %617 = vmatmul.bf16.gmra.mxu0 %v469
      %v618 = vpop.f32.mrf.mxu0
      %v619 = vadd.f32 %v243, %v618
      %v620 = vpop.f32.mrf.mxu0
      %v621 = vadd.f32 %v243, %v620
      %622 = vmatmul.bf16.gmra.mxu0 %v472
      %v623 = vpop.f32.mrf.mxu0
      %v624 = vadd.f32 %v243, %v623
      %v625 = vpop.f32.mrf.mxu0
      %v626 = vadd.f32 %v243, %v625
      %627 = vmatmul.bf16.gmra.mxu0 %v475
      %v628 = vpop.f32.mrf.mxu0
      %v629 = vadd.f32 %v243, %v628
      %v630 = vpop.f32.mrf.mxu0
      %v631 = vadd.f32 %v243, %v630
      %632 = vmatmul.bf16.gmra.mxu0 %v478
      %v633 = vpop.f32.mrf.mxu0
      %v634 = vadd.f32 %v243, %v633
      %v635 = vpop.f32.mrf.mxu0
      %v636 = vadd.f32 %v243, %v635
      %637 = vmatmul.bf16.gmra.mxu0 %v481
      %v638 = vpop.f32.mrf.mxu0
      %v639 = vadd.f32 %v243, %v638
      %v640 = vpop.f32.mrf.mxu0
      %v641 = vadd.f32 %v243, %v640
      %642 = vmatmul.bf16.gmra.mxu0 %v484
      %v643 = vpop.f32.mrf.mxu0
      %v644 = vadd.f32 %v243, %v643
      %v645 = vpop.f32.mrf.mxu0
      %v646 = vadd.f32 %v243, %v645
      %647 = vmatmul.bf16.gmra.mxu0 %v487
      %v648 = vpop.f32.mrf.mxu0
      %v649 = vadd.f32 %v243, %v648
      %v650 = vpop.f32.mrf.mxu0
      %v651 = vadd.f32 %v243, %v650
      %652 = vmatmul.bf16.gmra.mxu0 %v490
      %v653 = vpop.f32.mrf.mxu0
      %v654 = vadd.f32 %v243, %v653
      %v655 = vpop.f32.mrf.mxu0
      %v656 = vadd.f32 %v243, %v655
      %657 = vmatmul.bf16.gmra.mxu0 %v493
      %v658 = vpop.f32.mrf.mxu0
      %v659 = vadd.f32 %v243, %v658
      %v660 = vpop.f32.mrf.mxu0
      %v661 = vadd.f32 %v243, %v660
      %662 = vmatmul.bf16.gmra.mxu0 %v496
      %v663 = vpop.f32.mrf.mxu0
      %v664 = vadd.f32 %v243, %v663
      %v665 = vpop.f32.mrf.mxu0
      %v666 = vadd.f32 %v243, %v665
      %667 = vmatmul.bf16.gmra.mxu0 %v499
      %v668 = vpop.f32.mrf.mxu0
      %v669 = vadd.f32 %v243, %v668
      %v670 = vpop.f32.mrf.mxu0
      %v671 = vadd.f32 %v243, %v670
      %672 = vmatmul.bf16.gmra.mxu0 %v502
      %v673 = vpop.f32.mrf.mxu0
      %v674 = vadd.f32 %v243, %v673
      %v675 = vpop.f32.mrf.mxu0
      %v676 = vadd.f32 %v243, %v675
      %677 = vmatmul.bf16.gmra.mxu0 %v505
      %v678 = vpop.f32.mrf.mxu0
      %v679 = vadd.f32 %v243, %v678
      %v680 = vpop.f32.mrf.mxu0
      %v681 = vadd.f32 %v243, %v680
      %682 = vdwg.mxu0
      %v683 = vmax.f32 %v524, 0.0
      %v684 = vmax.f32 %v526, 0.0
      %v685 = vmax.f32 %v529, 0.0
      %v686 = vmax.f32 %v531, 0.0
      %v687 = vmax.f32 %v534, 0.0
      %v688 = vmax.f32 %v536, 0.0
      %v689 = vmax.f32 %v539, 0.0
      %v690 = vmax.f32 %v541, 0.0
      %v691 = vmax.f32 %v544, 0.0
      %v692 = vmax.f32 %v546, 0.0
      %v693 = vmax.f32 %v549, 0.0
      %v694 = vmax.f32 %v551, 0.0
      %v695 = vmax.f32 %v554, 0.0
      %v696 = vmax.f32 %v556, 0.0
      %v697 = vmax.f32 %v559, 0.0
      %v698 = vmax.f32 %v561, 0.0
      %v699 = vmax.f32 %v564, 0.0
      %v700 = vmax.f32 %v566, 0.0
      %v701 = vmax.f32 %v569, 0.0
      %v702 = vmax.f32 %v571, 0.0
      %v703 = vmax.f32 %v574, 0.0
      %v704 = vmax.f32 %v576, 0.0
      %v705 = vmax.f32 %v579, 0.0
      %v706 = vmax.f32 %v581, 0.0
      %v707 = vmax.f32 %v584, 0.0
      %v708 = vmax.f32 %v586, 0.0
      %v709 = vmax.f32 %v589, 0.0
      %v710 = vmax.f32 %v591, 0.0
      %v711 = vmax.f32 %v594, 0.0
      %v712 = vmax.f32 %v596, 0.0
      %v713 = vmax.f32 %v599, 0.0
      %v714 = vmax.f32 %v601, 0.0
      %v715 = vmax.f32 %v604, 0.0
      %v716 = vmax.f32 %v606, 0.0
      %v717 = vmax.f32 %v609, 0.0
      %v718 = vmax.f32 %v611, 0.0
      %v719 = vmax.f32 %v614, 0.0
      %v720 = vmax.f32 %v616, 0.0
      %v721 = vmax.f32 %v619, 0.0
      %v722 = vmax.f32 %v621, 0.0
      %v723 = vmax.f32 %v624, 0.0
      %v724 = vmax.f32 %v626, 0.0
      %v725 = vmax.f32 %v629, 0.0
      %v726 = vmax.f32 %v631, 0.0
      %v727 = vmax.f32 %v634, 0.0
      %v728 = vmax.f32 %v636, 0.0
      %v729 = vmax.f32 %v639, 0.0
      %v730 = vmax.f32 %v641, 0.0
      %v731 = vmax.f32 %v644, 0.0
      %v732 = vmax.f32 %v646, 0.0
      %v733 = vmax.f32 %v649, 0.0
      %v734 = vmax.f32 %v651, 0.0
      %v735 = vmax.f32 %v654, 0.0
      %v736 = vmax.f32 %v656, 0.0
      %v737 = vmax.f32 %v659, 0.0
      %v738 = vmax.f32 %v661, 0.0
      %v739 = vmax.f32 %v664, 0.0
      %v740 = vmax.f32 %v666, 0.0
      %v741 = vmax.f32 %v669, 0.0
      %v742 = vmax.f32 %v671, 0.0
      %v743 = vmax.f32 %v674, 0.0
      %v744 = vmax.f32 %v676, 0.0
      %v745 = vmax.f32 %v679, 0.0
      %v746 = vmax.f32 %v681, 0.0
      %v747 = vpack.c.bf16 %v683, %v683
      %v748 = vpack.c.bf16 %v684, %v684
      %v749 = vpack.c.bf16 %v685, %v685
      %v750 = vpack.c.bf16 %v686, %v686
      %v751 = vpack.c.bf16 %v687, %v687
      %v752 = vpack.c.bf16 %v688, %v688
      %v753 = vpack.c.bf16 %v689, %v689
      %v754 = vpack.c.bf16 %v690, %v690
      %v755 = vpack.c.bf16 %v691, %v691
      %v756 = vpack.c.bf16 %v692, %v692
      %v757 = vpack.c.bf16 %v693, %v693
      %v758 = vpack.c.bf16 %v694, %v694
      %v759 = vpack.c.bf16 %v695, %v695
      %v760 = vpack.c.bf16 %v696, %v696
      %v761 = vpack.c.bf16 %v697, %v697
      %v762 = vpack.c.bf16 %v698, %v698
      %v763 = vpack.c.bf16 %v699, %v699
      %v764 = vpack.c.bf16 %v700, %v700
      %v765 = vpack.c.bf16 %v701, %v701
      %v766 = vpack.c.bf16 %v702, %v702
      %v767 = vpack.c.bf16 %v703, %v703
      %v768 = vpack.c.bf16 %v704, %v704
      %v769 = vpack.c.bf16 %v705, %v705
      %v770 = vpack.c.bf16 %v706, %v706
      %v771 = vpack.c.bf16 %v707, %v707
      %v772 = vpack.c.bf16 %v708, %v708
      %v773 = vpack.c.bf16 %v709, %v709
      %v774 = vpack.c.bf16 %v710, %v710
      %v775 = vpack.c.bf16 %v711, %v711
      %v776 = vpack.c.bf16 %v712, %v712
      %v777 = vpack.c.bf16 %v713, %v713
      %v778 = vpack.c.bf16 %v714, %v714
      %v779 = vpack.c.bf16 %v715, %v715
      %v780 = vpack.c.bf16 %v716, %v716
      %v781 = vpack.c.bf16 %v717, %v717
      %v782 = vpack.c.bf16 %v718, %v718
      %v783 = vpack.c.bf16 %v719, %v719
      %v784 = vpack.c.bf16 %v720, %v720
      %v785 = vpack.c.bf16 %v721, %v721
      %v786 = vpack.c.bf16 %v722, %v722
      %v787 = vpack.c.bf16 %v723, %v723
      %v788 = vpack.c.bf16 %v724, %v724
      %v789 = vpack.c.bf16 %v725, %v725
      %v790 = vpack.c.bf16 %v726, %v726
      %v791 = vpack.c.bf16 %v727, %v727
      %v792 = vpack.c.bf16 %v728, %v728
      %v793 = vpack.c.bf16 %v729, %v729
      %v794 = vpack.c.bf16 %v730, %v730
      %v795 = vpack.c.bf16 %v731, %v731
      %v796 = vpack.c.bf16 %v732, %v732
      %v797 = vpack.c.bf16 %v733, %v733
      %v798 = vpack.c.bf16 %v734, %v734
      %v799 = vpack.c.bf16 %v735, %v735
      %v800 = vpack.c.bf16 %v736, %v736
      %v801 = vpack.c.bf16 %v737, %v737
      %v802 = vpack.c.bf16 %v738, %v738
      %v803 = vpack.c.bf16 %v739, %v739
      %v804 = vpack.c.bf16 %v740, %v740
      %v805 = vpack.c.bf16 %v741, %v741
      %v806 = vpack.c.bf16 %v742, %v742
      %v807 = vpack.c.bf16 %v743, %v743
      %v808 = vpack.c.bf16 %v744, %v744
      %v809 = vpack.c.bf16 %v745, %v745
      %v810 = vpack.c.bf16 %v746, %v746
      %vm811 = vcmask 125952
      %812 = vst.msk [vmem:[%s172] sm:$0xf] %vm811, %v747
      %813 = vst.msk [vmem:[%s172 + $0x4] sm:$0xf] %vm811, %v748
      %814 = vst.msk [vmem:[%s172 + $0x8] sm:$0xf] %vm811, %v749
      %815 = vst.msk [vmem:[%s172 + $0xc] sm:$0xf] %vm811, %v750
      %816 = vst.msk [vmem:[%s172 + $0x10] sm:$0xf] %vm811, %v751
      %817 = vst.msk [vmem:[%s172 + $0x14] sm:$0xf] %vm811, %v752
      %818 = vst.msk [vmem:[%s172 + $0x18] sm:$0xf] %vm811, %v753
      %819 = vst.msk [vmem:[%s172 + $0x1c] sm:$0xf] %vm811, %v754
      %820 = vst.msk [vmem:[%s172 + $0x20] sm:$0xf] %vm811, %v755
      %821 = vst.msk [vmem:[%s172 + $0x24] sm:$0xf] %vm811, %v756
      %822 = vst.msk [vmem:[%s172 + $0x28] sm:$0xf] %vm811, %v757
      %823 = vst.msk [vmem:[%s172 + $0x2c] sm:$0xf] %vm811, %v758
      %824 = vst.msk [vmem:[%s172 + $0x30] sm:$0xf] %vm811, %v759
      %825 = vst.msk [vmem:[%s172 + $0x34] sm:$0xf] %vm811, %v760
      %826 = vst.msk [vmem:[%s172 + $0x38] sm:$0xf] %vm811, %v761
      %827 = vst.msk [vmem:[%s172 + $0x3c] sm:$0xf] %vm811, %v762
      %828 = vst.msk [vmem:[%s172 + $0x40] sm:$0xf] %vm811, %v763
      %829 = vst.msk [vmem:[%s172 + $0x44] sm:$0xf] %vm811, %v764
      %830 = vst.msk [vmem:[%s172 + $0x48] sm:$0xf] %vm811, %v765
      %831 = vst.msk [vmem:[%s172 + $0x4c] sm:$0xf] %vm811, %v766
      %832 = vst.msk [vmem:[%s172 + $0x50] sm:$0xf] %vm811, %v767
      %833 = vst.msk [vmem:[%s172 + $0x54] sm:$0xf] %vm811, %v768
      %834 = vst.msk [vmem:[%s172 + $0x58] sm:$0xf] %vm811, %v769
      %835 = vst.msk [vmem:[%s172 + $0x5c] sm:$0xf] %vm811, %v770
      %836 = vst.msk [vmem:[%s172 + $0x60] sm:$0xf] %vm811, %v771
      %837 = vst.msk [vmem:[%s172 + $0x64] sm:$0xf] %vm811, %v772
      %838 = vst.msk [vmem:[%s172 + $0x68] sm:$0xf] %vm811, %v773
      %839 = vst.msk [vmem:[%s172 + $0x6c] sm:$0xf] %vm811, %v774
      %840 = vst.msk [vmem:[%s172 + $0x70] sm:$0xf] %vm811, %v775
      %841 = vst.msk [vmem:[%s172 + $0x74] sm:$0xf] %vm811, %v776
      %842 = vst.msk [vmem:[%s172 + $0x78] sm:$0xf] %vm811, %v777
      %843 = vst.msk [vmem:[%s172 + $0x7c] sm:$0xf] %vm811, %v778
      %844 = vst.msk [vmem:[%s172 + $0x80] sm:$0xf] %vm811, %v779
      %845 = vst.msk [vmem:[%s172 + $0x84] sm:$0xf] %vm811, %v780
      %846 = vst.msk [vmem:[%s172 + $0x88] sm:$0xf] %vm811, %v781
      %847 = vst.msk [vmem:[%s172 + $0x8c] sm:$0xf] %vm811, %v782
      %848 = vst.msk [vmem:[%s172 + $0x90] sm:$0xf] %vm811, %v783
      %849 = vst.msk [vmem:[%s172 + $0x94] sm:$0xf] %vm811, %v784
      %850 = vst.msk [vmem:[%s172 + $0x98] sm:$0xf] %vm811, %v785
      %851 = vst.msk [vmem:[%s172 + $0x9c] sm:$0xf] %vm811, %v786
      %852 = vst.msk [vmem:[%s172 + $0xa0] sm:$0xf] %vm811, %v787
      %853 = vst.msk [vmem:[%s172 + $0xa4] sm:$0xf] %vm811, %v788
      %854 = vst.msk [vmem:[%s172 + $0xa8] sm:$0xf] %vm811, %v789
      %855 = vst.msk [vmem:[%s172 + $0xac] sm:$0xf] %vm811, %v790
      %856 = vst.msk [vmem:[%s172 + $0xb0] sm:$0xf] %vm811, %v791
      %857 = vst.msk [vmem:[%s172 + $0xb4] sm:$0xf] %vm811, %v792
      %858 = vst.msk [vmem:[%s172 + $0xb8] sm:$0xf] %vm811, %v793
      %859 = vst.msk [vmem:[%s172 + $0xbc] sm:$0xf] %vm811, %v794
      %860 = vst.msk [vmem:[%s172 + $0xc0] sm:$0xf] %vm811, %v795
      %861 = vst.msk [vmem:[%s172 + $0xc4] sm:$0xf] %vm811, %v796
      %862 = vst.msk [vmem:[%s172 + $0xc8] sm:$0xf] %vm811, %v797
      %863 = vst.msk [vmem:[%s172 + $0xcc] sm:$0xf] %vm811, %v798
      %864 = vst.msk [vmem:[%s172 + $0xd0] sm:$0xf] %vm811, %v799
      %865 = vst.msk [vmem:[%s172 + $0xd4] sm:$0xf] %vm811, %v800
      %866 = vst.msk [vmem:[%s172 + $0xd8] sm:$0xf] %vm811, %v801
      %867 = vst.msk [vmem:[%s172 + $0xdc] sm:$0xf] %vm811, %v802
      %868 = vst.msk [vmem:[%s172 + $0xe0] sm:$0xf] %vm811, %v803
      %869 = vst.msk [vmem:[%s172 + $0xe4] sm:$0xf] %vm811, %v804
      %870 = vst.msk [vmem:[%s172 + $0xe8] sm:$0xf] %vm811, %v805
      %871 = vst.msk [vmem:[%s172 + $0xec] sm:$0xf] %vm811, %v806
      %872 = vst.msk [vmem:[%s172 + $0xf0] sm:$0xf] %vm811, %v807
      %873 = vst.msk [vmem:[%s172 + $0xf4] sm:$0xf] %vm811, %v808
      %874 = vst.msk [vmem:[%s172 + $0xf8] sm:$0xf] %vm811, %v809
      %875 = vst.msk [vmem:[%s172 + $0xfc] sm:$0xf] %vm811, %v810
      %s876 = smul.u32 64, %s14
      %p877 = scmp.lt.s32.totalorder %s876, 255
      %s878 = scalar_select %p877, %s876, 255
      %s879 = smul.addr %s878, 4
      %s880 = scalar_lea.vmem %s3, %s879
      // Predicated region
      $region33: #{scale_regressor.2} parent=31 // pred_check
        %p881 = pneg %p100
      $region34: #{scale_regressor.2} parent=31 // pred_check_branch
        %883 = sbr.rel (%p881) target = $region36
      $region35: #{scale_regressor.2} parent=31 // pred_region
        %s884 = smul.u32 64, %s14
      $region36: #{scale_regressor.2} parent=31 // pred_fallthru
        _
    $region32: #{scale_regressor.2} parent=5 // pred_fallthru
      _
    %p885 = scmp.le.s32.totalorder 2, %s9
    // Predicated region
    $region37: #{scale_regressor.2} parent=5 // pred_check
      %p886 = pneg %p885
    $region38: #{scale_regressor.2} parent=5 // pred_check_branch
      %888 = sbr.rel (%p886) target = $region40
    $region39: #{scale_regressor.2} parent=5 // pred_region
      %s889 = ssub.s32 %s9, 2
      // Predicated region
      $region41: #{scale_regressor.2} parent=39 // pred_check
        %p890 = pneg %p106
      $region42: #{scale_regressor.2} parent=39 // pred_check_branch
        %892 = sbr.rel (%p890) target = $region44
      $region43: #{scale_regressor.2} parent=39 // pred_region
        %s893 = smul.u32 64, %s15
        %p894 = scmp.lt.s32.totalorder %s893, 255
        %s895 = scalar_select %p894, %s893, 255
        %s896 = smul.addr %s895, 4
        %s897 = scalar_lea.vmem %s3, %s896
      $region44: #{scale_regressor.2} parent=39 // pred_fallthru
        _
    $region40: #{scale_regressor.2} parent=5 // pred_fallthru
      _
  $region6: #{scale_regressor.2} parent=0 // loop_footer
    %s13 = sadd.s32 1, %s9
  $region7: #{scale_regressor.2} parent=0 // loop_footer_branch
    %8 = sbr.rel target = $region3
  $region8: #{scale_regressor.2} parent=0 // loop_exit
    _

// kernel: scale_regressor.3
$region0: #{scale_regressor.3}
  #allocation0 [shape = 'u32[]', space=smem, size = 0x4, offset = 0x4, fixed_abs, tag = 'smem constant byte address 0x4 - core index']
  #allocation1 [shape = 'u32[72,128]{1,0:T(1,128)}', space=vmem, size = 0x9000, scoped, tag = 'internal scratch']
  %s0 = inlined_call_operand.vmem [shape: bf16[128,144], index: 0, kind: input, shape index: {}]
  %s1 = inlined_call_operand.vmem [shape: bf16[144,32], index: 1, kind: input, shape index: {}]
  %s2 = inlined_call_operand.vmem [shape: f32[1,32], index: 2, kind: input, shape index: {}]
  %s3 = inlined_call_operand.vmem [shape: bf16[128,32], index: 3, kind: output, shape index: {}]
  %s4 = sld [smem:[#allocation0]]
  $region22: #{scale_regressor.3} parent=0
    _
  %s6 = ssub.s32 1, %s4
  %s7 = scalar_select 0, %s6, %s4
  // Predicated region
  $region2: #{scale_regressor.3} parent=0 // pred_check
    _
  $region3: #{scale_regressor.3} parent=0 // pred_check_branch
    %9 = sbr.rel (0) target = $region5
  $region4: #{scale_regressor.3} parent=0 // pred_region
    _
  $region5: #{scale_regressor.3} parent=0 // pred_fallthru
    _
  // Predicated region
  $region6: #{scale_regressor.3} parent=0 // pred_check
    _
  $region7: #{scale_regressor.3} parent=0 // pred_check_branch
    %11 = sbr.rel (0) target = $region9
  $region8: #{scale_regressor.3} parent=0 // pred_region
    _
  $region9: #{scale_regressor.3} parent=0 // pred_fallthru
    _
  // Predicated region
  $region10: #{scale_regressor.3} parent=0 // pred_check
    _
  $region11: #{scale_regressor.3} parent=0 // pred_check_branch
    %13 = sbr.rel (0) target = $region13
  $region12: #{scale_regressor.3} parent=0 // pred_region
    _
  $region13: #{scale_regressor.3} parent=0 // pred_fallthru
    _
  %v15 = vld [vmem:[%s0] sm:$0xff]
  %v16 = vld [vmem:[%s0 + $0x8] sm:$0xff]
  %v17 = vld [vmem:[%s0 + $0x10] sm:$0xff]
  %v18 = vld [vmem:[%s0 + $0x18] sm:$0xff]
  %v19 = vld [vmem:[%s0 + $0x20] sm:$0xff]
  %v20 = vld [vmem:[%s0 + $0x28] sm:$0xff]
  %v21 = vld [vmem:[%s0 + $0x30] sm:$0xff]
  %v22 = vld [vmem:[%s0 + $0x38] sm:$0xff]
  %v23 = vld [vmem:[%s0 + $0x40] sm:$0xff]
  %v24 = vld [vmem:[%s0 + $0x48] sm:$0xff]
  %v25 = vld [vmem:[%s0 + $0x50] sm:$0xff]
  %v26 = vld [vmem:[%s0 + $0x58] sm:$0xff]
  %v27 = vld [vmem:[%s0 + $0x60] sm:$0xff]
  %v28 = vld [vmem:[%s0 + $0x68] sm:$0xff]
  %v29 = vld [vmem:[%s0 + $0x70] sm:$0xff]
  %v30 = vld [vmem:[%s0 + $0x78] sm:$0xff]
  %v31 = vld [vmem:[%s1] sm:$0xf]
  %v32 = vld [vmem:[%s1 + $0x4] sm:$0xf]
  %v33 = vld [vmem:[%s1 + $0x8] sm:$0xf]
  %v34 = vld [vmem:[%s1 + $0xc] sm:$0xf]
  %v35 = vld [vmem:[%s1 + $0x10] sm:$0xf]
  %v36 = vld [vmem:[%s1 + $0x14] sm:$0xf]
  %v37 = vld [vmem:[%s1 + $0x18] sm:$0xf]
  %v38 = vld [vmem:[%s1 + $0x1c] sm:$0xf]
  %v39 = vld [vmem:[%s1 + $0x20] sm:$0xf]
  %v40 = vld [vmem:[%s1 + $0x24] sm:$0xf]
  %v41 = vld [vmem:[%s1 + $0x28] sm:$0xf]
  %v42 = vld [vmem:[%s1 + $0x2c] sm:$0xf]
  %v43 = vld [vmem:[%s1 + $0x30] sm:$0xf]
  %v44 = vld [vmem:[%s1 + $0x34] sm:$0xf]
  %v45 = vld [vmem:[%s1 + $0x38] sm:$0xf]
  %v46 = vld [vmem:[%s1 + $0x3c] sm:$0xf]
  %v47 = vld [vmem:[%s1 + $0x40] sm:$0xf]
  %v48 = vld [vmem:[%s1 + $0x44] sm:$0xf]
  %v49 = vld [vmem:[%s2] sm:$0x1]
  %v51 = vperm.slane %v49, 0
  %v69 = vunpack.c.l.b16 %v15
  %v70 = vunpack.c.h.b16 %v15
  %v71 = vunpack.c.l.b16 %v16
  %v72 = vunpack.c.h.b16 %v16
  %v73 = vunpack.c.l.b16 %v17
  %v74 = vunpack.c.h.b16 %v17
  %v75 = vunpack.c.l.b16 %v18
  %v76 = vunpack.c.h.b16 %v18
  %v77 = vunpack.c.l.b16 %v19
  %v78 = vunpack.c.h.b16 %v19
  %v79 = vunpack.c.l.b16 %v20
  %v80 = vunpack.c.h.b16 %v20
  %v81 = vunpack.c.l.b16 %v21
  %v82 = vunpack.c.h.b16 %v21
  %v83 = vunpack.c.l.b16 %v22
  %v84 = vunpack.c.h.b16 %v22
  %v85 = vunpack.c.l.b16 %v23
  %v86 = vunpack.c.h.b16 %v23
  %v87 = vunpack.c.l.b16 %v24
  %v88 = vunpack.c.h.b16 %v24
  %v89 = vunpack.c.l.b16 %v25
  %v90 = vunpack.c.h.b16 %v25
  %v91 = vunpack.c.l.b16 %v26
  %v92 = vunpack.c.h.b16 %v26
  %v93 = vunpack.c.l.b16 %v27
  %v94 = vunpack.c.h.b16 %v27
  %v95 = vunpack.c.l.b16 %v28
  %v96 = vunpack.c.h.b16 %v28
  %v97 = vunpack.c.l.b16 %v29
  %v98 = vunpack.c.h.b16 %v29
  %v99 = vunpack.c.l.b16 %v30
  %v100 = vunpack.c.h.b16 %v30
  %v101 = vpack.c.b16 %v71, %v69
  %v102 = vpack.c.b16 %v72, %v70
  %v103 = vpack.c.b16 %v75, %v73
  %v104 = vpack.c.b16 %v76, %v74
  %v105 = vpack.c.b16 %v79, %v77
  %v106 = vpack.c.b16 %v80, %v78
  %v107 = vpack.c.b16 %v83, %v81
  %v108 = vpack.c.b16 %v84, %v82
  %v109 = vpack.c.b16 %v87, %v85
  %v110 = vpack.c.b16 %v88, %v86
  %v111 = vpack.c.b16 %v91, %v89
  %v112 = vpack.c.b16 %v92, %v90
  %v113 = vpack.c.b16 %v95, %v93
  %v114 = vpack.c.b16 %v96, %v94
  %v115 = vpack.c.b16 %v99, %v97
  %v116 = vpack.c.b16 %v100, %v98
  %v143 = vunpack.c.l.b16 %v31
  %v144 = vunpack.c.l.b16 %v32
  %v145 = vunpack.c.l.b16 %v33
  %v146 = vunpack.c.l.b16 %v34
  %v147 = vunpack.c.l.b16 %v35
  %v148 = vunpack.c.l.b16 %v36
  %v149 = vunpack.c.l.b16 %v37
  %v150 = vunpack.c.l.b16 %v38
  %v151 = vunpack.c.l.b16 %v39
  %v152 = vunpack.c.l.b16 %v40
  %v153 = vunpack.c.l.b16 %v41
  %v154 = vunpack.c.l.b16 %v42
  %v155 = vunpack.c.l.b16 %v43
  %v156 = vunpack.c.l.b16 %v44
  %v157 = vunpack.c.l.b16 %v45
  %v158 = vunpack.c.l.b16 %v46
  %v159 = vunpack.c.l.b16 %v47
  %v160 = vunpack.c.l.b16 %v48
  %v161 = vpack.c.b16 %v144, %v143
  %v162 = vpack.c.b16 %v146, %v145
  %v163 = vpack.c.b16 %v148, %v147
  %v164 = vpack.c.b16 %v150, %v149
  %v165 = vpack.c.b16 %v152, %v151
  %v166 = vpack.c.b16 %v154, %v153
  %v167 = vpack.c.b16 %v156, %v155
  %v168 = vpack.c.b16 %v158, %v157
  %v169 = vpack.c.b16 %v160, %v159
  %vm179 = vcmask 130048
  %v181 = vsel %vm179, %v102, 0
  %v184 = vsel %vm179, %v104, 0
  %v187 = vsel %vm179, %v106, 0
  %v190 = vsel %vm179, %v108, 0
  %v193 = vsel %vm179, %v110, 0
  %v196 = vsel %vm179, %v112, 0
  %v199 = vsel %vm179, %v114, 0
  %v202 = vsel %vm179, %v116, 0
  %204 = vmatpush.bf16.msra.mxu0 %v168
  %205 = vmatpush.bf16.msra.mxu0 %v167
  %206 = vmatpush.bf16.msra.mxu0 %v166
  %207 = vmatpush.bf16.msra.mxu0 %v165
  %208 = vmatpush.bf16.msra.mxu0 %v164
  %209 = vmatpush.bf16.msra.mxu0 %v163
  %210 = vmatpush.bf16.msra.mxu0 %v162
  %211 = vmatpush.bf16.msra.mxu0 %v161
  %212 = vmatmul.bf16.gmra.mxu0 %v101
  %v213 = vpop.f32.mrf.mxu0
  %v214 = vadd.f32 %v51, %v213
  %v215 = vpop.f32.mrf.mxu0
  %v216 = vadd.f32 %v51, %v215
  %217 = vmatmul.bf16.gmra.mxu0 %v103
  %v218 = vpop.f32.mrf.mxu0
  %v219 = vadd.f32 %v51, %v218
  %v220 = vpop.f32.mrf.mxu0
  %v221 = vadd.f32 %v51, %v220
  %222 = vmatmul.bf16.gmra.mxu0 %v105
  %v223 = vpop.f32.mrf.mxu0
  %v224 = vadd.f32 %v51, %v223
  %v225 = vpop.f32.mrf.mxu0
  %v226 = vadd.f32 %v51, %v225
  %227 = vmatmul.bf16.gmra.mxu0 %v107
  %v228 = vpop.f32.mrf.mxu0
  %v229 = vadd.f32 %v51, %v228
  %v230 = vpop.f32.mrf.mxu0
  %v231 = vadd.f32 %v51, %v230
  %232 = vmatmul.bf16.gmra.mxu0 %v109
  %v233 = vpop.f32.mrf.mxu0
  %v234 = vadd.f32 %v51, %v233
  %v235 = vpop.f32.mrf.mxu0
  %v236 = vadd.f32 %v51, %v235
  %237 = vmatmul.bf16.gmra.mxu0 %v111
  %v238 = vpop.f32.mrf.mxu0
  %v239 = vadd.f32 %v51, %v238
  %v240 = vpop.f32.mrf.mxu0
  %v241 = vadd.f32 %v51, %v240
  %242 = vmatmul.bf16.gmra.mxu0 %v113
  %v243 = vpop.f32.mrf.mxu0
  %v244 = vadd.f32 %v51, %v243
  %v245 = vpop.f32.mrf.mxu0
  %v246 = vadd.f32 %v51, %v245
  %247 = vmatmul.bf16.gmra.mxu0 %v115
  %v248 = vpop.f32.mrf.mxu0
  %v249 = vadd.f32 %v51, %v248
  %v250 = vpop.f32.mrf.mxu0
  %v251 = vadd.f32 %v51, %v250
  %252 = vdwg.mxu0
  %253 = vmatpush.bf16.msra.mxu0 0
  %254 = vmatpush.bf16.msra.mxu0 0
  %255 = vmatpush.bf16.msra.mxu0 0
  %256 = vmatpush.bf16.msra.mxu0 0
  %257 = vmatpush.bf16.msra.mxu0 0
  %258 = vmatpush.bf16.msra.mxu0 0
  %259 = vmatpush.bf16.msra.mxu0 0
  %260 = vmatpush.bf16.msra.mxu0 %v169
  %261 = vmatmul.bf16.gmra.mxu0 %v181
  %v262 = vpop.f32.mrf.mxu0
  %v263 = vadd.f32 %v214, %v262
  %v264 = vpop.f32.mrf.mxu0
  %v265 = vadd.f32 %v216, %v264
  %266 = vmatmul.bf16.gmra.mxu0 %v184
  %v267 = vpop.f32.mrf.mxu0
  %v268 = vadd.f32 %v219, %v267
  %v269 = vpop.f32.mrf.mxu0
  %v270 = vadd.f32 %v221, %v269
  %271 = vmatmul.bf16.gmra.mxu0 %v187
  %v272 = vpop.f32.mrf.mxu0
  %v273 = vadd.f32 %v224, %v272
  %v274 = vpop.f32.mrf.mxu0
  %v275 = vadd.f32 %v226, %v274
  %276 = vmatmul.bf16.gmra.mxu0 %v190
  %v277 = vpop.f32.mrf.mxu0
  %v278 = vadd.f32 %v229, %v277
  %v279 = vpop.f32.mrf.mxu0
  %v280 = vadd.f32 %v231, %v279
  %281 = vmatmul.bf16.gmra.mxu0 %v193
  %v282 = vpop.f32.mrf.mxu0
  %v283 = vadd.f32 %v234, %v282
  %v284 = vpop.f32.mrf.mxu0
  %v285 = vadd.f32 %v236, %v284
  %286 = vmatmul.bf16.gmra.mxu0 %v196
  %v287 = vpop.f32.mrf.mxu0
  %v288 = vadd.f32 %v239, %v287
  %v289 = vpop.f32.mrf.mxu0
  %v290 = vadd.f32 %v241, %v289
  %291 = vmatmul.bf16.gmra.mxu0 %v199
  %v292 = vpop.f32.mrf.mxu0
  %v293 = vadd.f32 %v244, %v292
  %v294 = vpop.f32.mrf.mxu0
  %v295 = vadd.f32 %v246, %v294
  %296 = vmatmul.bf16.gmra.mxu0 %v202
  %v297 = vpop.f32.mrf.mxu0
  %v298 = vadd.f32 %v249, %v297
  %v299 = vpop.f32.mrf.mxu0
  %v300 = vadd.f32 %v251, %v299
  %301 = vdwg.mxu0
  %v302 = vmax.f32 %v263, 0.0
  %v303 = vmax.f32 %v265, 0.0
  %v304 = vmax.f32 %v268, 0.0
  %v305 = vmax.f32 %v270, 0.0
  %v306 = vmax.f32 %v273, 0.0
  %v307 = vmax.f32 %v275, 0.0
  %v308 = vmax.f32 %v278, 0.0
  %v309 = vmax.f32 %v280, 0.0
  %v310 = vmax.f32 %v283, 0.0
  %v311 = vmax.f32 %v285, 0.0
  %v312 = vmax.f32 %v288, 0.0
  %v313 = vmax.f32 %v290, 0.0
  %v314 = vmax.f32 %v293, 0.0
  %v315 = vmax.f32 %v295, 0.0
  %v316 = vmax.f32 %v298, 0.0
  %v317 = vmax.f32 %v300, 0.0
  %v318 = vpack.c.bf16 %v302, %v302
  %v319 = vpack.c.bf16 %v303, %v303
  %v320 = vpack.c.bf16 %v304, %v304
  %v321 = vpack.c.bf16 %v305, %v305
  %v322 = vpack.c.bf16 %v306, %v306
  %v323 = vpack.c.bf16 %v307, %v307
  %v324 = vpack.c.bf16 %v308, %v308
  %v325 = vpack.c.bf16 %v309, %v309
  %v326 = vpack.c.bf16 %v310, %v310
  %v327 = vpack.c.bf16 %v311, %v311
  %v328 = vpack.c.bf16 %v312, %v312
  %v329 = vpack.c.bf16 %v313, %v313
  %v330 = vpack.c.bf16 %v314, %v314
  %v331 = vpack.c.bf16 %v315, %v315
  %v332 = vpack.c.bf16 %v316, %v316
  %v333 = vpack.c.bf16 %v317, %v317
  %vm334 = vcmask 257024
  %335 = vst.msk [vmem:[%s3] sm:$0xf] %vm334, %v318
  %336 = vst.msk [vmem:[%s3 + $0x4] sm:$0xf] %vm334, %v319
  %337 = vst.msk [vmem:[%s3 + $0x8] sm:$0xf] %vm334, %v320
  %338 = vst.msk [vmem:[%s3 + $0xc] sm:$0xf] %vm334, %v321
  %339 = vst.msk [vmem:[%s3 + $0x10] sm:$0xf] %vm334, %v322
  %340 = vst.msk [vmem:[%s3 + $0x14] sm:$0xf] %vm334, %v323
  %341 = vst.msk [vmem:[%s3 + $0x18] sm:$0xf] %vm334, %v324
  %342 = vst.msk [vmem:[%s3 + $0x1c] sm:$0xf] %vm334, %v325
  %343 = vst.msk [vmem:[%s3 + $0x20] sm:$0xf] %vm334, %v326
  %344 = vst.msk [vmem:[%s3 + $0x24] sm:$0xf] %vm334, %v327
  %345 = vst.msk [vmem:[%s3 + $0x28] sm:$0xf] %vm334, %v328
  %346 = vst.msk [vmem:[%s3 + $0x2c] sm:$0xf] %vm334, %v329
  %347 = vst.msk [vmem:[%s3 + $0x30] sm:$0xf] %vm334, %v330
  %348 = vst.msk [vmem:[%s3 + $0x34] sm:$0xf] %vm334, %v331
  %349 = vst.msk [vmem:[%s3 + $0x38] sm:$0xf] %vm334, %v332
  %350 = vst.msk [vmem:[%s3 + $0x3c] sm:$0xf] %vm334, %v333
  // Predicated region
  $region14: #{scale_regressor.3} parent=0 // pred_check
    _
  $region15: #{scale_regressor.3} parent=0 // pred_check_branch
    %352 = sbr.rel (0) target = $region17
  $region16: #{scale_regressor.3} parent=0 // pred_region
    _
  $region17: #{scale_regressor.3} parent=0 // pred_fallthru
    _
  // Predicated region
  $region18: #{scale_regressor.3} parent=0 // pred_check
    _
  $region19: #{scale_regressor.3} parent=0 // pred_check_branch
    %354 = sbr.rel (0) target = $region21
  $region20: #{scale_regressor.3} parent=0 // pred_region
    _
  $region21: #{scale_regressor.3} parent=0 // pred_fallthru
    _

</llo_original>
